<compile_context>
chip_gen: v5e
topology: v5e:2x2
jax: 0.10.0
libtpu: 0.0.40
codegen_flags: <defaults>
</compile_context>

<pallas_src>
import functools

import jax
import jax.numpy as jnp
from jax import lax
from jax.experimental import pallas as pl
from jax.experimental.pallas import tpu as pltpu

GAMMA = 1.5
ALPHA = 0.5
LANES = 128
SUBLANES = 8
NUM_CORES = 2  # leading "parallel" grid axis: 2nd TC on v7x, no-op loop elsewhere


def _round_up(x, m):
    return (x + m - 1) // m * m


def _sublane_align(dtype):
    # minimal sublane multiple for a packed dtype
    return {4: 8, 2: 16, 1: 32}.get(jnp.dtype(dtype).itemsize, 8)


def _target_row_tile():
    # v4/v5-class: stay at 1 MiB/f32 input tile (small scoped-VMEM default,
    # genuinely HBM-bound). v6e/v7x: 2 MiB tiles cut per-step overhead.
    try:
        kind = jax.devices()[0].device_kind.lower()
    except Exception:
        return 2048
    if "v4" in kind or "v5" in kind:
        return 2048
    return 4096


def _focal_loss_kernel(pred_ref, true_ref, out_ref, acc_ref, *, gamma, alpha,
                       row_tile, steps, num_tiles, rem, needs_mask, has_ghost):
    c = pl.program_id(0)          # core axis ("parallel")
    k = pl.program_id(1)          # serial reduction axis ("arbitrary")
    tile = c * steps + k          # global row-tile index (may be a ghost tile)

    @pl.when(k == 0)
    def _():
        acc_ref[...] = jnp.zeros_like(acc_ref)

    x = pred_ref[...].astype(jnp.float32)
    y = true_ref[...].astype(jnp.float32)

    # Shared exp(-|x|) drives BOTH the stable BCE-with-logits and the sigmoid.
    e = jnp.exp(-jnp.abs(x))
    # BCEWithLogitsLoss(reduction='none'): max(x,0) - x*y + log(1 + exp(-|x|))
    bce = jnp.maximum(x, 0.0) - x * y + jnp.log1p(e)

    r = pl.reciprocal(1.0 + e, approx=False)   # EUP slot, off the binding VALU
    p = jnp.where(x >= 0, r, e * r)            # sigmoid(x), no second exp

    # z = 1 - p_t folded:  p_t = y*p + (1-y)*(1-p)  =>  z = y - p*(2y - 1)
    z = y - p * (2.0 * y - 1.0)

    if gamma == 1.5:
        mod = z * jnp.sqrt(z)                  # z**1.5 without exp/log pair
    elif gamma == 2.0:
        mod = z * z
    elif gamma == 1.0:
        mod = z
    else:
        # generic fallback, guarded against z == 0 (saturated logits)
        mod = jnp.where(z > 0.0, jnp.power(jnp.maximum(z, 1e-30), gamma), 0.0)

    loss = bce * mod
    if alpha != 0.5:
        # alpha_factor = y*alpha + (1-y)*(1-alpha) = y*(2a-1) + (1-a)
        loss = loss * (y * (2.0 * alpha - 1.0) + (1.0 - alpha))
    # (alpha == 0.5 -> constant 0.5 factor applied once in the wrapper)

    def _accum(v):
        # VPU-only reduction of (row_tile, 128) onto the resident (8, 128) acc.
        acc_ref[...] += jnp.sum(
            v.reshape(row_tile // SUBLANES, SUBLANES, LANES), axis=0)

    last_tile = num_tiles - 1
    if needs_mask:
        # Hot interior tiles: no mask math at all.
        @pl.when(tile < last_tile)
        def _():
            _accum(loss)

        # Last real tile: mask pad tail + partial-block overhang with a SELECT
        # (not arithmetic masking), so garbage/NaN in the overhang cannot leak.
        @pl.when(tile == last_tile)
        def _():
            row = lax.broadcasted_iota(jnp.int32, (row_tile, LANES), 0)
            col = lax.broadcasted_iota(jnp.int32, (row_tile, LANES), 1)
            idx = row * LANES + col            # tile-local => no int32 overflow
            _accum(jnp.where(idx < rem, loss, 0.0))
        # ghost tiles (tile > last_tile) contribute nothing
    elif has_ghost:
        @pl.when(tile <= last_tile)
        def _():
            _accum(loss)
    else:
        _accum(loss)

    @pl.when(k == steps - 1)
    def _():
        out_ref[0] = acc_ref[...]              # per-core (8,128) partial sums


def focal_loss(pred, true, *, gamma=GAMMA, alpha=ALPHA):
    """Focal loss over logits `pred` and targets `true` (same shape), mean-reduced."""
    assert pred.shape == true.shape
    n_valid = pred.size
    assert n_valid > 0

    align = max(_sublane_align(pred.dtype), _sublane_align(true.dtype))

    # Minimal padding: none when size % 128 == 0 (reshape is a free bitcast),
    # otherwise pad to a lane*sublane multiple (< 128*align junk elements).
    if n_valid % LANES == 0:
        n_pad = n_valid
    else:
        n_pad = _round_up(n_valid, LANES * align)
    rows = n_pad // LANES

    target = _target_row_tile()
    # Split rows as evenly as possible over NUM_CORES * chunks tiles: bounds
    # padding/overhang to < align rows and balances the two cores.
    num_chunks = _round_up(max(pl.cdiv(rows, target), 1), NUM_CORES)
    row_tile = _round_up(pl.cdiv(rows, num_chunks), align)
    num_tiles = pl.cdiv(rows, row_tile)
    steps = pl.cdiv(num_tiles, NUM_CORES)
    has_ghost = steps * NUM_CORES != num_tiles

    # Valid elements in the last real tile (pad + overhang all live there).
    rem = n_valid - (num_tiles - 1) * row_tile * LANES
    needs_mask = rem != row_tile * LANES

    def _prep(a):
        flat = a.reshape(-1)
        if n_pad != n_valid:
            flat = jnp.pad(flat, (0, n_pad - n_valid))
        # Native dtype is streamed (halves HBM bytes for bf16 inputs); upcast
        # to f32 happens inside the kernel.
        return flat.reshape(rows, LANES)

    pred2d = _prep(pred)
    true2d = _prep(true)

    if has_ghost:
        def in_map(c, k):
            # Clamp the (at most one) ghost tile to a valid block: keeps the
            # DMA in bounds; its contribution is skipped in-kernel.
            return (jnp.minimum(c * steps + k, num_tiles - 1), 0)
    else:
        def in_map(c, k):
            return (c * steps + k, 0)

    kernel = functools.partial(
        _focal_loss_kernel, gamma=gamma, alpha=alpha, row_tile=row_tile,
        steps=steps, num_tiles=num_tiles, rem=rem, needs_mask=needs_mask,
        has_ghost=has_ghost)

    in_bytes = n_valid * (jnp.dtype(pred.dtype).itemsize
                          + jnp.dtype(true.dtype).itemsize)
    cost = pl.CostEstimate(
        flops=30 * n_valid,
        transcendentals=3 * n_valid,
        bytes_accessed=in_bytes + NUM_CORES * SUBLANES * LANES * 4)

    compiler_params = pltpu.CompilerParams(
        dimension_semantics=("parallel", "arbitrary"),
        vmem_limit_bytes=(48 * 1024 * 1024 if target >= 4096 else None))

    partials = pl.pallas_call(
        kernel,
        out_shape=jax.ShapeDtypeStruct((NUM_CORES, SUBLANES, LANES), jnp.float32),
        grid_spec=pltpu.PrefetchScalarGridSpec(
            num_scalar_prefetch=0,
            grid=(NUM_CORES, steps),
            in_specs=[
                pl.BlockSpec((row_tile, LANES), in_map),
                pl.BlockSpec((row_tile, LANES), in_map),
            ],
            out_specs=pl.BlockSpec((1, SUBLANES, LANES), lambda c, k: (c, 0, 0)),
            scratch_shapes=[pltpu.VMEM((SUBLANES, LANES), jnp.float32)],
        ),
        compiler_params=compiler_params,
        cost_estimate=cost,
    )(pred2d, true2d)

    # Single cross-lane reduce of 2*8*128 partials + mean; alpha==0.5 factor
    # folded into this one scalar scale instead of a per-element multiply.
    scale = (0.5 if alpha == 0.5 else 1.0) / n_valid
    return jnp.sum(partials) * jnp.float32(scale)


def _focal_loss_ref(pred, true, gamma=GAMMA, alpha=ALPHA):
    x = pred.astype(jnp.float32)
    y = true.astype(jnp.float32)
    bce = jnp.maximum(x, 0.0) - x * y + jnp.log1p(jnp.exp(-jnp.abs(x)))
    p = jax.nn.sigmoid(x)
    p_t = y * p + (1.0 - y) * (1.0 - p)
    alpha_factor = y * alpha + (1.0 - y) * (1.0 - alpha)
    mod = jnp.power(1.0 - p_t, gamma)
    return jnp.mean(bce * alpha_factor * mod)


if __name__ == "__main__":
    key = jax.random.PRNGKey(0)
    k1, k2, k3, k4 = jax.random.split(key, 4)

    # Detection-style logits/targets: (B, C, H, W) = (2, 4, 16, 16)
    pred = jax.random.normal(k1, (2, 4, 16, 16), dtype=jnp.float32)
    true = (jax.random.uniform(k2, (2, 4, 16, 16)) > 0.5).astype(jnp.float32)

    loss = focal_loss(pred, true)
    jax.block_until_ready(loss)
    ref = _focal_loss_ref(pred, true)
    assert jnp.allclose(loss, ref, rtol=1e-4, atol=1e-6), (loss, ref)

    # Ragged size: exercises minimal-pad + last-tile mask + ghost-tile skip.
    pred_r = jax.random.normal(k3, (3, 5, 7), dtype=jnp.float32)
    true_r = (jax.random.uniform(k4, (3, 5, 7)) > 0.5).astype(jnp.float32)
    loss_r = focal_loss(pred_r, true_r)
    jax.block_until_ready(loss_r)
    ref_r = _focal_loss_ref(pred_r, true_r)
    assert jnp.allclose(loss_r, ref_r, rtol=1e-4, atol=1e-6), (loss_r, ref_r)

    print("KERNEL_OK")
</pallas_src>

<mosaic_0001>
module attributes {stable_mosaic.version = 11 : i64} {
  func.func @_focal_loss_kernel(%arg0: i32, %arg1: i32, %arg2: memref<8x128xf32, #tpu.memory_space<vmem>>, %arg3: memref<8x128xf32, #tpu.memory_space<vmem>>, %arg4: memref<1x8x128xf32, #tpu.memory_space<vmem>>, %arg5: memref<8x128xf32, #tpu.memory_space<vmem>>) attributes {dimension_semantics = [#tpu.dimension_semantics<parallel>, #tpu.dimension_semantics<arbitrary>], iteration_bounds = array<i64: 2, 1>, scalar_prefetch = 0 : i64, scratch_operands = 1 : i64, tpu.core_type = #tpu.core_type<tc>, window_params = [{transform_indices = @transform_0, window_bounds = array<i64: 8, 128>}, {transform_indices = @transform_1, window_bounds = array<i64: 8, 128>}, {transform_indices = @transform_2, window_bounds = array<i64: 1, 8, 128>}]} {
    %c0_i32 = arith.constant 0 : i32
    %0 = arith.cmpi eq, %arg1, %c0_i32 : i32
    %1 = arith.extui %0 : i1 to i32
    %c0_i32_0 = arith.constant 0 : i32
    %2 = arith.cmpi ne, %1, %c0_i32_0 : i32
    scf.if %2 {
      %cst_16 = arith.constant 0.000000e+00 : f32
      %39 = vector.broadcast %cst_16 : f32 to vector<8x128xf32>
      %c0_17 = arith.constant 0 : index
      %c0_18 = arith.constant 0 : index
      %40 = vector.load %arg5[%c0_17, %c0_18] : memref<8x128xf32, #tpu.memory_space<vmem>>, vector<8x128xf32>
      tpu.vector_store %arg5[%c0_17, %c0_18], %39 {strides = array<i32>} : memref<8x128xf32, #tpu.memory_space<vmem>>, vector<8x128xf32>,
    } else {
    }
    %c0 = arith.constant 0 : index
    %c0_1 = arith.constant 0 : index
    %3 = vector.load %arg2[%c0, %c0_1] : memref<8x128xf32, #tpu.memory_space<vmem>>, vector<8x128xf32>
    %c0_2 = arith.constant 0 : index
    %c0_3 = arith.constant 0 : index
    %4 = vector.load %arg3[%c0_2, %c0_3] : memref<8x128xf32, #tpu.memory_space<vmem>>, vector<8x128xf32>
    %5 = math.absf %3 : vector<8x128xf32>
    %cst = arith.constant 0.000000e+00 : f32
    %6 = vector.broadcast %cst : f32 to vector<8x128xf32>
    %7 = arith.subf %6, %5 : vector<8x128xf32>
    %8 = math.exp %7 : vector<8x128xf32>
    %cst_4 = arith.constant 0.000000e+00 : f32
    %9 = vector.broadcast %cst_4 : f32 to vector<8x128xf32>
    %10 = arith.maximumf %3, %9 : vector<8x128xf32>
    %11 = arith.mulf %3, %4 : vector<8x128xf32>
    %12 = arith.subf %10, %11 : vector<8x128xf32>
    %13 = math.log1p %8 : vector<8x128xf32>
    %14 = arith.addf %12, %13 : vector<8x128xf32>
    %cst_5 = arith.constant 1.000000e+00 : f32
    %15 = vector.broadcast %cst_5 : f32 to vector<8x128xf32>
    %16 = arith.addf %15, %8 : vector<8x128xf32>
    %17 = tpu.reciprocal %16 : vector<8x128xf32> -> vector<8x128xf32>
    %cst_6 = arith.constant 0.000000e+00 : f32
    %18 = vector.broadcast %cst_6 : f32 to vector<8x128xf32>
    %19 = arith.cmpf oge, %3, %18 : vector<8x128xf32>
    %20 = arith.mulf %8, %17 : vector<8x128xf32>
    %21 = arith.select %19, %17, %20 : vector<8x128xi1>, vector<8x128xf32>
    %cst_7 = arith.constant 2.000000e+00 : f32
    %22 = vector.broadcast %cst_7 : f32 to vector<8x128xf32>
    %23 = arith.mulf %22, %4 : vector<8x128xf32>
    %cst_8 = arith.constant 1.000000e+00 : f32
    %24 = vector.broadcast %cst_8 : f32 to vector<8x128xf32>
    %25 = arith.subf %23, %24 : vector<8x128xf32>
    %26 = arith.mulf %21, %25 : vector<8x128xf32>
    %27 = arith.subf %4, %26 : vector<8x128xf32>
    %28 = math.sqrt %27 : vector<8x128xf32>
    %29 = arith.mulf %27, %28 : vector<8x128xf32>
    %30 = arith.mulf %14, %29 : vector<8x128xf32>
    %c0_9 = arith.constant 0 : index
    %c0_10 = arith.constant 0 : index
    %31 = vector.load %arg5[%c0_9, %c0_10] : memref<8x128xf32, #tpu.memory_space<vmem>>, vector<8x128xf32>
    %32 = vector.shape_cast %30 : vector<8x128xf32> to vector<1x8x128xf32>
    %cst_11 = arith.constant dense<0.000000e+00> : vector<8x128xf32>
    %33 = vector.multi_reduction <add>, %32, %cst_11 [0] : vector<1x8x128xf32> to vector<8x128xf32>
    %34 = arith.addf %31, %33 : vector<8x128xf32>
    %c0_12 = arith.constant 0 : index
    %c0_13 = arith.constant 0 : index
    %35 = vector.load %arg5[%c0_12, %c0_13] : memref<8x128xf32, #tpu.memory_space<vmem>>, vector<8x128xf32>
    tpu.vector_store %arg5[%c0_12, %c0_13], %34 {strides = array<i32>} : memref<8x128xf32, #tpu.memory_space<vmem>>, vector<8x128xf32>,
    %c0_i32_14 = arith.constant 0 : i32
    %36 = arith.cmpi eq, %arg1, %c0_i32_14 : i32
    %37 = arith.extui %36 : i1 to i32
    %c0_i32_15 = arith.constant 0 : i32
    %38 = arith.cmpi ne, %37, %c0_i32_15 : i32
    scf.if %38 {
      %c0_16 = arith.constant 0 : index
      %c0_17 = arith.constant 0 : index
      %39 = vector.load %arg5[%c0_16, %c0_17] : memref<8x128xf32, #tpu.memory_space<vmem>>, vector<8x128xf32>
      %c0_18 = arith.constant 0 : index
      %c0_19 = arith.constant 0 : index
      %c0_20 = arith.constant 0 : index
      %40 = vector.load %arg4[%c0_18, %c0_19, %c0_20] : memref<1x8x128xf32, #tpu.memory_space<vmem>>, vector<1x8x128xf32>
      %41 = vector.shape_cast %40 : vector<1x8x128xf32> to vector<8x128xf32>
      %42 = vector.shape_cast %39 : vector<8x128xf32> to vector<1x8x128xf32>
      tpu.vector_store %arg4[%c0_18, %c0_19, %c0_20], %42 {strides = array<i32>} : memref<1x8x128xf32, #tpu.memory_space<vmem>>, vector<1x8x128xf32>,
    } else {
    }
    return
  }
  func.func @transform_0(%arg0: i32, %arg1: i32) -> (i32, i32) {
    %c1_i32 = arith.constant 1 : i32
    %0 = arith.muli %arg0, %c1_i32 : i32
    %1 = arith.addi %0, %arg1 : i32
    %c0_i32 = arith.constant 0 : i32
    %c0_i32_0 = arith.constant 0 : i32
    return %1, %c0_i32 : i32, i32
  }
  func.func @transform_1(%arg0: i32, %arg1: i32) -> (i32, i32) {
    %c1_i32 = arith.constant 1 : i32
    %0 = arith.muli %arg0, %c1_i32 : i32
    %1 = arith.addi %0, %arg1 : i32
    %c0_i32 = arith.constant 0 : i32
    %c0_i32_0 = arith.constant 0 : i32
    return %1, %c0_i32 : i32, i32
  }
  func.func @transform_2(%arg0: i32, %arg1: i32) -> (i32, i32, i32) {
    %c0_i32 = arith.constant 0 : i32
    %c0_i32_0 = arith.constant 0 : i32
    %c0_i32_1 = arith.constant 0 : i32
    return %arg0, %c0_i32, %c0_i32_0 : i32, i32, i32
  }
}

</mosaic_0001>

<llo_original>
// kernel: tpu_custom_call.1
$region0: #{tpu_custom_call.1}
  #allocation0 [shape = 'u32[]', space=smem, size = 0x4, offset = 0x4, fixed_abs, tag = 'smem constant byte address 0x4 - core index']
  #allocation1 [shape = 'u32[72,128]{1,0:T(1,128)}', space=vmem, size = 0x9000, scoped, tag = 'internal scratch']
  #allocation2 [shape = 'f32[8,128]{1,0:T(8,128)}', space=vmem, size = 0x1000, scoped, tag = 'scratch operand']
  %s0 = inlined_call_operand.hbm [shape: f32[16,128], index: 0, kind: input, shape index: {}]
  %s1 = inlined_call_operand.hbm [shape: f32[16,128], index: 1, kind: input, shape index: {}]
  %s2 = inlined_call_operand.hbm [shape: f32[2,8,128], index: 2, kind: output, shape index: {}]
  %s3 = sld [smem:[#allocation0]]
  $region57: #{tpu_custom_call.1} parent=0
    _
  %s5 = ssub.s32 1, %s3
  %s6 = scalar_select 0, %s5, %s3
  $region1: #{tpu_custom_call.1} parent=0
    #allocation3 [shape = 'u8[8192]{0}', space=vmem, size = 0x2000, scoped, tag = 'input window, operand 0']
    #allocation4 [shape = 's32[2]{0}', space=sflag, size = 0x8, scoped, tag = 'scoped memory for tpu_custom_call.1']
    #allocation5 [shape = 's32[2]{0}', space=sflag, size = 0x8, scoped, tag = 'scoped memory for tpu_custom_call.1']
    #allocation6 [shape = 'u8[8192]{0}', space=vmem, size = 0x2000, scoped, tag = 'input window, operand 1']
    #allocation7 [shape = 's32[2]{0}', space=sflag, size = 0x8, scoped, tag = 'scoped memory for tpu_custom_call.1']
    #allocation8 [shape = 'u8[8192]{0}', space=vmem, size = 0x2000, scoped, tag = 'output window, operand 0']
    %7 = vsyncpa [#allocation4], 0
    %s8 = scalar_lea.sflag [#allocation4], 1
    %9 = vsyncpa %s8, 0
    %10 = vsyncpa [#allocation7], 0
    %s11 = scalar_lea.sflag [#allocation7], 1
    %12 = vsyncpa %s11, 0
    %13 = vsyncpa [#allocation5], 0
    %s14 = scalar_lea.sflag [#allocation5], 1
    %15 = vsyncpa %s14, 0
    loop: start=0, step=1, limit=4
    $region2: #{tpu_custom_call.1} parent=1 // loop_pre_header
      _
    $region3: #{tpu_custom_call.1} parent=1 // loop_header
      %s17 = sphi 0, %s21
      %p18 = scmp.ge.s32.totalorder %s17, 4
      %s24 = sphi 0, %s36
      %s25 = sphi 0, %s32
      %s26 = sphi 0, %s24
      %s27 = sphi 0, %s25
      %s28 = sphi 0, %s26
      %s29 = sphi 0, %s27
      %s41 = sphi 0, %s43
      %s44 = sphi 0, %s41
      %s45 = sphi 0, %s44
      %s61 = sphi 0, %s45
      %s69 = sphi 0, %s71
      %s72 = sphi 0, %s69
      %s73 = sphi 0, %s72
      %s89 = sphi 0, %s73
      %s95 = sphi 0, %s97
      %s98 = sphi 0, %s95
      %s99 = sphi 0, %s98
      %s115 = sphi 0, %s99
    $region4: #{tpu_custom_call.1} parent=1 // loop_header_branch
      %20 = sbr.rel (%p18) target = $region8
    $region5: #{tpu_custom_call.1} parent=1 // loop_body
      %s22 = ssub.s32 %s17, 1
      %s23 = ssub.s32 %s17, 2
      %s30 = sadd.s32 1, %s25
      %p31 = scmp.ge.s32.totalorder %s30, 1
      %s32 = scalar_select %p31, 0, %s30
      %s33 = sadd.s32 1, %s24
      %s34 = scalar_select %p31, %s33, %s24
      %p35 = scmp.ge.s32.totalorder %s34, 2
      %s36 = scalar_select %p35, 0, %s34
      %s37 = sadd.s32 %s24, %s25
      %s38 = sadd.s32 %s36, %s32
      %s39 = ssub.s32 %s37, %s38
      %p40 = scmp.eq.s32.totalorder %s39, 0
      %s42 = sadd.s32 %s41, 1
      %s43 = scalar_select %p40, %s41, %s42
      %p46 = pneg %p40
      %p47 = scmp.eq.s32.totalorder %s17, 1
      %p48 = por %p46, %p47
      %p49 = scmp.ne.s32.totalorder %s41, %s44
      %p50 = scmp.eq.s32.totalorder %s17, 0
      %p51 = por %p49, %p50
      %p52 = scmp.ne.s32.totalorder %s41, %s44
      %p53 = scmp.eq.s32.totalorder %s22, 1
      %p54 = por %p52, %p53
      %p55 = scmp.ne.s32.totalorder %s44, %s45
      %p56 = scmp.eq.s32.totalorder %s22, 0
      %p57 = por %p55, %p56
      %p58 = scmp.ne.s32.totalorder %s44, %s45
      %p59 = scmp.eq.s32.totalorder %s23, 1
      %p60 = por %p58, %p59
      %p62 = scmp.ne.s32.totalorder %s45, %s61
      %p63 = scmp.eq.s32.totalorder %s23, 0
      %p64 = por %p62, %p63
      %s65 = sadd.s32 %s24, %s25
      %s66 = sadd.s32 %s36, %s32
      %s67 = ssub.s32 %s65, %s66
      %p68 = scmp.eq.s32.totalorder %s67, 0
      %s70 = sadd.s32 %s69, 1
      %s71 = scalar_select %p68, %s69, %s70
      %p74 = pneg %p68
      %p75 = scmp.eq.s32.totalorder %s17, 1
      %p76 = por %p74, %p75
      %p77 = scmp.ne.s32.totalorder %s69, %s72
      %p78 = scmp.eq.s32.totalorder %s17, 0
      %p79 = por %p77, %p78
      %p80 = scmp.ne.s32.totalorder %s69, %s72
      %p81 = scmp.eq.s32.totalorder %s22, 1
      %p82 = por %p80, %p81
      %p83 = scmp.ne.s32.totalorder %s72, %s73
      %p84 = scmp.eq.s32.totalorder %s22, 0
      %p85 = por %p83, %p84
      %p86 = scmp.ne.s32.totalorder %s72, %s73
      %p87 = scmp.eq.s32.totalorder %s23, 1
      %p88 = por %p86, %p87
      %p90 = scmp.ne.s32.totalorder %s73, %s89
      %p91 = scmp.eq.s32.totalorder %s23, 0
      %p92 = por %p90, %p91
      %s93 = ssub.s32 %s24, %s36
      %p94 = scmp.eq.s32.totalorder %s93, 0
      %s96 = sadd.s32 %s95, 1
      %s97 = scalar_select %p94, %s95, %s96
      %p100 = pneg %p94
      %p101 = scmp.eq.s32.totalorder %s17, 1
      %p102 = por %p100, %p101
      %p103 = scmp.ne.s32.totalorder %s95, %s98
      %p104 = scmp.eq.s32.totalorder %s17, 0
      %p105 = por %p103, %p104
      %p106 = scmp.ne.s32.totalorder %s95, %s98
      %p107 = scmp.eq.s32.totalorder %s22, 1
      %p108 = por %p106, %p107
      %p109 = scmp.ne.s32.totalorder %s98, %s99
      %p110 = scmp.eq.s32.totalorder %s22, 0
      %p111 = por %p109, %p110
      %p112 = scmp.ne.s32.totalorder %s98, %s99
      %p113 = scmp.eq.s32.totalorder %s23, 1
      %p114 = por %p112, %p113
      %p116 = scmp.ne.s32.totalorder %s99, %s115
      %p117 = scmp.eq.s32.totalorder %s23, 0
      %p118 = por %p116, %p117
      %p119 = scmp.le.s32.totalorder 1, %s17
      %p120 = scmp.lt.s32.totalorder %s17, 3
      %p121 = pnand %p119, %p120
      %p122 = pneg %p121
      // Predicated region
      $region9: #{tpu_custom_call.1} parent=5 // pred_check
        _
      $region10: #{tpu_custom_call.1} parent=5 // pred_check_branch
        %124 = sbr.rel (%p121) target = $region12
      $region11: #{tpu_custom_call.1} parent=5 // pred_region
        %s125 = ssub.s32 %s17, 1
      $region12: #{tpu_custom_call.1} parent=5 // pred_fallthru
        _
      %p126 = scmp.lt.s32.totalorder %s17, 2
      // Predicated region
      $region13: #{tpu_custom_call.1} parent=5 // pred_check
        %p127 = pneg %p126
      $region14: #{tpu_custom_call.1} parent=5 // pred_check_branch
        %129 = sbr.rel (%p127) target = $region16
      $region15: #{tpu_custom_call.1} parent=5 // pred_region
        // Predicated region
        $region17: #{tpu_custom_call.1} parent=15 // pred_check
          %p130 = pneg %p51
        $region18: #{tpu_custom_call.1} parent=15 // pred_check_branch
          %132 = sbr.rel (%p130) target = $region20
        $region19: #{tpu_custom_call.1} parent=15 // pred_region
          %s133 = sand.u32 %s41, 1
          %s134 = scalar_lea.sflag [#allocation4], %s133
          %s135 = sand.u32 %s41, 1
          %s136 = smul.addr %s135, 8
          %s137 = scalar_lea.vmem [#allocation3], %s136
          %s138 = sadd.s32 %s24, %s25
          %140 = vsyncadd %s134, 0
          %s141 = smul.addr %s138, 8
          %s142 = scalar_lea.hbm %s0, %s141
          %s144 = sshll.u32 %s142, 4
          %s145 = int_to_ptr.hbm [resolvable:$true] %s144
          %s146 = sshll.u32 %s137, 4
          %s147 = int_to_ptr.vmem [resolvable:$true] %s146
          %149 = dma.hbm_to_vmem [thread:$0]  %s145, 128, %s147, %s134
        $region20: #{tpu_custom_call.1} parent=15 // pred_fallthru
          _
        // Predicated region
        $region21: #{tpu_custom_call.1} parent=15 // pred_check
          %p150 = pneg %p79
        $region22: #{tpu_custom_call.1} parent=15 // pred_check_branch
          %152 = sbr.rel (%p150) target = $region24
        $region23: #{tpu_custom_call.1} parent=15 // pred_region
          %s153 = sand.u32 %s69, 1
          %s154 = scalar_lea.sflag [#allocation7], %s153
          %s155 = sand.u32 %s69, 1
          %s156 = smul.addr %s155, 8
          %s157 = scalar_lea.vmem [#allocation6], %s156
          %s158 = sadd.s32 %s24, %s25
          %160 = vsyncadd %s154, 0
          %s161 = smul.addr %s158, 8
          %s162 = scalar_lea.hbm %s1, %s161
          %s164 = sshll.u32 %s162, 4
          %s165 = int_to_ptr.hbm [resolvable:$true] %s164
          %s166 = sshll.u32 %s157, 4
          %s167 = int_to_ptr.vmem [resolvable:$true] %s166
          %169 = dma.hbm_to_vmem [thread:$0]  %s165, 128, %s167, %s154
        $region24: #{tpu_custom_call.1} parent=15 // pred_fallthru
          _
      $region16: #{tpu_custom_call.1} parent=5 // pred_fallthru
        _
      %p170 = scmp.le.s32.totalorder 1, %s17
      %p171 = scmp.lt.s32.totalorder %s17, 3
      %p172 = pnand %p170, %p171
      %p173 = pneg %p172
      // Predicated region
      $region25: #{tpu_custom_call.1} parent=5 // pred_check
        _
      $region26: #{tpu_custom_call.1} parent=5 // pred_check_branch
        %175 = sbr.rel (%p172) target = $region28
      $region27: #{tpu_custom_call.1} parent=5 // pred_region
        %s176 = ssub.s32 %s17, 1
        %s177 = sand.u32 %s44, 1
        %s178 = scalar_lea.sflag [#allocation4], %s177
        %s179 = sand.u32 %s44, 1
        %s180 = smul.addr %s179, 8
        %s181 = scalar_lea.vmem [#allocation3], %s180
        // Predicated region
        $region29: #{tpu_custom_call.1} parent=27 // pred_check
          %p182 = pneg %p57
        $region30: #{tpu_custom_call.1} parent=27 // pred_check_branch
          %184 = sbr.rel (%p182) target = $region32
        $region31: #{tpu_custom_call.1} parent=27 // pred_region
          %186 = dma.done %s178, 128
        $region32: #{tpu_custom_call.1} parent=27 // pred_fallthru
          _
        %s187 = sand.u32 %s72, 1
        %s188 = scalar_lea.sflag [#allocation7], %s187
        %s189 = sand.u32 %s72, 1
        %s190 = smul.addr %s189, 8
        %s191 = scalar_lea.vmem [#allocation6], %s190
        // Predicated region
        $region33: #{tpu_custom_call.1} parent=27 // pred_check
          %p192 = pneg %p85
        $region34: #{tpu_custom_call.1} parent=27 // pred_check_branch
          %194 = sbr.rel (%p192) target = $region36
        $region35: #{tpu_custom_call.1} parent=27 // pred_region
          %196 = dma.done %s188, 128
        $region36: #{tpu_custom_call.1} parent=27 // pred_fallthru
          _
        %s197 = sand.u32 %s44, 1
        %s198 = scalar_lea.sflag [#allocation4], %s197
        %s199 = sand.u32 %s44, 1
        %s200 = smul.addr %s199, 8
        %s201 = scalar_lea.vmem [#allocation3], %s200
        %p202 = pneg %p57
        %p203 = pneg %p54
        %s204 = sand.u32 %s72, 1
        %s205 = scalar_lea.sflag [#allocation7], %s204
        %s206 = sand.u32 %s72, 1
        %s207 = smul.addr %s206, 8
        %s208 = scalar_lea.vmem [#allocation6], %s207
        %p209 = pneg %p85
        %p210 = pneg %p82
        %p211 = pneg %p111
        %p212 = pneg %p108
        %s213 = sand.u32 %s98, 1
        %s214 = scalar_lea.sflag [#allocation5], %s213
        %s215 = sand.u32 %s98, 1
        %s216 = smul.addr %s215, 8
        %s217 = scalar_lea.vmem [#allocation8], %s216
        %s218 = sadd.s32 %s26, %s27
        %s219 = sadd.s32 %s26, %s27
        %p220 = scmp.eq.s32.totalorder %s27, 0
        // Predicated region
        $region37: #{tpu_custom_call.1} parent=27 // pred_check
          %p221 = pneg %p220
        $region38: #{tpu_custom_call.1} parent=27 // pred_check_branch
          %223 = sbr.rel (%p221) target = $region40
        $region39: #{tpu_custom_call.1} parent=27 // pred_region
          %224 = vst [vmem:[#allocation2] sm:$0xff] 0.0
        $region40: #{tpu_custom_call.1} parent=27 // pred_fallthru
          _
        %v225 = vld [vmem:[%s181] sm:$0xff]
        %v226 = vld [vmem:[%s191] sm:$0xff]
        %v227 = vand.u32 2147483647, %v225
        %v228 = vsub.f32 0.0, %v227
        %v229 = vmul.f32 %v228, 1.442695
        %v230 = vpow.pop %v229
        %v231 = vmax.f32 %v225, 0.0
        %v232 = vmul.f32 %v225, %v226
        %v233 = vsub.f32 %v231, %v232
        %v234 = vadd.f32 %v230, 1.0
        %v235 = vlog2.pop %v234
        %v236 = vmul.f32 %v235, 0.6931472
        %v237 = vmul.f32 -0.5, %v230
        %v238 = vadd.f32 %v237, 1.0
        %v239 = vmul.f32 %v238, %v230
        %v240 = vand.u32 2147483647, %v230
        %vm241 = vcmp.lt.f32.partialorder %v240, 0.0004427343
        %v242 = vsel %vm241, %v239, %v236
        %v243 = vadd.f32 %v233, %v242
        %v244 = vadd.f32 %v230, 1.0
        %v245 = vrcp.pop %v244
        %v246 = vmul.f32 %v244, %v245
        %v247 = vsub.f32 1.0, %v246
        %v248 = vmul.f32 %v245, %v247
        %v249 = vadd.f32 %v245, %v248
        %vm250 = vweird.f32 %v244
        %vm251 = vweird.f32 %v245
        %vm252 = vmor %vm250, %vm251
        %v253 = vsel %vm252, %v245, %v249
        %v254 = vand.u32 2147483647, %v244
        %vm255 = vcmp.eq.f32.partialorder %v254, 8.507059e+37
        %v256 = vand.u32 %v244, 2147483648
        %v257 = vor.u32 1.1754944e-38, %v256
        %v258 = vsel %vm255, %v257, %v253
        %vm259 = vcmp.ge.f32.partialorder %v225, 0.0
        %v260 = vmul.f32 %v230, %v258
        %v261 = vsel %vm259, %v258, %v260
        %v262 = vmul.f32 %v226, 2.0
        %v263 = vsub.f32 %v262, 1.0
        %v264 = vmul.f32 %v261, %v263
        %v265 = vsub.f32 %v226, %v264
        %v266 = vrsqrt.pop %v265
        %v267 = vmul.f32 %v266, %v265
        %v268 = vmul.f32 %v267, %v266
        %v269 = vmul.f32 0.5, %v268
        %v270 = vsub.f32 1.5, %v269
        %v271 = vmul.f32 %v266, %v270
        %v272 = vmul.f32 %v265, %v271
        %vm273 = vcmp.eq.f32.partialorder %v265, inf
        %v274 = vsel %vm273, %v265, %v272
        %vm275 = vcmp.eq.f32.partialorder %v265, 0.0
        %v276 = vand.u32 %v265, 2147483648
        %v277 = vsel %vm275, %v276, %v274
        %v278 = vmul.f32 %v265, %v277
        %v279 = vmul.f32 %v243, %v278
        %v280 = vld [vmem:[#allocation2] sm:$0xff]
        %v281 = vadd.f32 %v279, 0.0
        %v282 = vadd.f32 %v280, %v281
        %283 = vst [vmem:[#allocation2] sm:$0xff] %v282
        // Predicated region
        $region41: #{tpu_custom_call.1} parent=27 // pred_check
          %p284 = pneg %p220
        $region42: #{tpu_custom_call.1} parent=27 // pred_check_branch
          %286 = sbr.rel (%p284) target = $region44
        $region43: #{tpu_custom_call.1} parent=27 // pred_region
          %v287 = vld [vmem:[#allocation2] sm:$0xff]
          %288 = vst [vmem:[%s217] sm:$0xff] %v287
        $region44: #{tpu_custom_call.1} parent=27 // pred_fallthru
          _
        %s289 = sand.u32 %s98, 1
        %s290 = scalar_lea.sflag [#allocation5], %s289
        %s291 = sand.u32 %s98, 1
        %s292 = smul.addr %s291, 8
        %s293 = scalar_lea.vmem [#allocation8], %s292
        // Predicated region
        $region45: #{tpu_custom_call.1} parent=27 // pred_check
          %p294 = pneg %p108
        $region46: #{tpu_custom_call.1} parent=27 // pred_check_branch
          %296 = sbr.rel (%p294) target = $region48
        $region47: #{tpu_custom_call.1} parent=27 // pred_region
          %298 = vsyncadd %s290, 0
          %s299 = smul.addr %s26, 8
          %s300 = scalar_lea.hbm %s2, %s299
          %s302 = sshll.u32 %s293, 4
          %s303 = int_to_ptr.vmem [resolvable:$true] %s302
          %s304 = sshll.u32 %s300, 4
          %s305 = int_to_ptr.hbm [resolvable:$true] %s304
          %307 = dma.vmem_to_hbm [thread:$0]  %s303, 128, %s305, %s290
        $region48: #{tpu_custom_call.1} parent=27 // pred_fallthru
          _
      $region28: #{tpu_custom_call.1} parent=5 // pred_fallthru
        _
      %p308 = scmp.le.s32.totalorder 2, %s17
      // Predicated region
      $region49: #{tpu_custom_call.1} parent=5 // pred_check
        %p309 = pneg %p308
      $region50: #{tpu_custom_call.1} parent=5 // pred_check_branch
        %311 = sbr.rel (%p309) target = $region52
      $region51: #{tpu_custom_call.1} parent=5 // pred_region
        %s312 = ssub.s32 %s17, 2
        // Predicated region
        $region53: #{tpu_custom_call.1} parent=51 // pred_check
          %p313 = pneg %p114
        $region54: #{tpu_custom_call.1} parent=51 // pred_check_branch
          %315 = sbr.rel (%p313) target = $region56
        $region55: #{tpu_custom_call.1} parent=51 // pred_region
          %s316 = sand.u32 %s99, 1
          %s317 = scalar_lea.sflag [#allocation5], %s316
          %s318 = sand.u32 %s99, 1
          %s319 = smul.addr %s318, 8
          %s320 = scalar_lea.vmem [#allocation8], %s319
          %322 = dma.done %s317, 128
        $region56: #{tpu_custom_call.1} parent=51 // pred_fallthru
          _
      $region52: #{tpu_custom_call.1} parent=5 // pred_fallthru
        _
    $region6: #{tpu_custom_call.1} parent=1 // loop_footer
      %s21 = sadd.s32 1, %s17
    $region7: #{tpu_custom_call.1} parent=1 // loop_footer_branch
      %16 = sbr.rel target = $region3
    $region8: #{tpu_custom_call.1} parent=1 // loop_exit
      _
    %323 = vsyncpa [#allocation4], 1
    %s324 = scalar_lea.sflag [#allocation4], 1
    %325 = vsyncpa %s324, 1
    %326 = vsyncpa [#allocation7], 1
    %s327 = scalar_lea.sflag [#allocation7], 1
    %328 = vsyncpa %s327, 1
    %329 = vsyncpa [#allocation5], 1
    %s330 = scalar_lea.sflag [#allocation5], 1
    %331 = vsyncpa %s330, 1

</llo_original>
